<compile_context>
chip_gen: v5e
topology: v5e:2x2
jax: 0.10.0
libtpu: 0.0.40
codegen_flags: <defaults>
</compile_context>

<pallas_src>
import jax
import jax.numpy as jnp
from jax.experimental import pallas as pl
from jax.experimental.pallas import tpu as pltpu


def _round_up(x: int, m: int) -> int:
    return ((x + m - 1) // m) * m


def _cdiv(a: int, b: int) -> int:
    return (a + b - 1) // b


def _balanced_tile(dim: int, gran: int, cap: int):
    """Pick a tile size (multiple of `gran`, <= cap) that keeps the block count
    implied by `cap` while minimizing padding. Returns (tile, padded_dim)."""
    dim_r = _round_up(max(dim, 1), gran)
    cap_r = max(gran, (cap // gran) * gran)
    n_blocks = _cdiv(dim_r, cap_r)
    units = dim_r // gran
    tile = gran * _cdiv(units, n_blocks)
    return tile, tile * n_blocks


def _device_config():
    """Per-generation tile caps + optional scoped-VMEM limit."""
    try:
        kind = jax.devices()[0].device_kind.lower()
    except Exception:
        kind = ""
    if ("v5 lite" in kind) or ("v5e" in kind) or ("v5lite" in kind):
        # 16 MiB scoped default; 4x128x128 MXU -> 128-multiples are enough.
        return dict(tm=512, tn=256, tk=1024, vmem_limit=None, two_cores=False)
    if "v6" in kind:
        # 128 MiB physical VMEM: go big and raise the scoped limit.
        return dict(tm=512, tn=512, tk=2048, vmem_limit=64 * 1024 * 1024, two_cores=False)
    if "7" in kind:
        # v7x: only 64 MiB physical VMEM per TC but 2 TCs per chip.
        return dict(tm=512, tn=512, tk=1024, vmem_limit=None, two_cores=True)
    return dict(tm=512, tn=512, tk=1024, vmem_limit=None, two_cores=False)


# ----------------------------- kernels ------------------------------------


def _linear_kernel_single_k(x_ref, wt_ref, b_ref, o_ref):
    # Whole K fits in one tile: no scratch, no K grid axis.
    acc = jnp.dot(x_ref[...], wt_ref[...], preferred_element_type=jnp.float32)
    o_ref[...] = (acc + b_ref[...].astype(jnp.float32)).astype(o_ref.dtype)


def _linear_kernel_acc_out(x_ref, wt_ref, b_ref, o_ref):
    # K-tiled, f32 output: accumulate directly into the resident output block
    # (output BlockSpec is independent of k, so it stays in VMEM across K).
    k = pl.program_id(2)

    @pl.when(k == 0)
    def _():
        o_ref[...] = pl.broadcast_to(b_ref[...].astype(o_ref.dtype), o_ref.shape)

    o_ref[...] += jnp.dot(x_ref[...], wt_ref[...], preferred_element_type=jnp.float32)


def _linear_kernel_acc_scratch(x_ref, wt_ref, b_ref, o_ref, acc_ref):
    # K-tiled, non-f32 output: f32 scratch accumulator, cast in the epilogue.
    k = pl.program_id(2)

    @pl.when(k == 0)
    def _():
        acc_ref[...] = pl.broadcast_to(b_ref[...].astype(jnp.float32), acc_ref.shape)

    acc_ref[...] += jnp.dot(x_ref[...], wt_ref[...], preferred_element_type=jnp.float32)

    @pl.when(k == pl.num_programs(2) - 1)
    def _():
        o_ref[...] = acc_ref[...].astype(o_ref.dtype)


# ----------------------------- module -------------------------------------


class PallasLinear:
    """Pallas TPU equivalent of the probing `Linear` module's forward.

    Weight relayout/padding happens once here (not per forward call):
    W [num_classes, input_dim] -> W^T [input_dim, num_classes], zero-padded to
    tile multiples. The per-call path only pads x (if needed), runs the tiled
    MXU matmul, adds the bias, and slices off output padding.
    """

    def __init__(self, weight, bias, *, use_bf16_matmul=False, tile_cap_overrides=None):
        C, D = weight.shape
        assert bias.shape == (C,)
        self.C, self.D = C, D

        cfg = dict(_device_config())
        if tile_cap_overrides:
            cfg.update(tile_cap_overrides)
        self.cfg = cfg

        self.tn, self.Np = _balanced_tile(C, 128, cfg["tn"])
        self.tk, self.Kp = _balanced_tile(D, 128, cfg["tk"])

        self.mxu_dtype = jnp.bfloat16 if use_bf16_matmul else None

        wt = jnp.asarray(weight).T  # one-time [D, C] relayout (canonical MXU matmul)
        if self.mxu_dtype is not None:
            wt = wt.astype(self.mxu_dtype)
        if (self.Kp, self.Np) != (D, C):
            wt = jnp.pad(wt, ((0, self.Kp - D), (0, self.Np - C)))
        self.wt_p = jax.block_until_ready(wt)

        b = jnp.asarray(bias)
        if self.Np != C:
            b = jnp.pad(b, (0, self.Np - C))
        self.b_p = jax.block_until_ready(b.reshape(1, self.Np))

    def __call__(self, x):
        B, D = x.shape
        assert D == self.D
        cfg = self.cfg
        tn, tk, Np, Kp = self.tn, self.tk, self.Np, self.Kp
        out_dtype = x.dtype

        tm, Mp = _balanced_tile(B, 8, cfg["tm"])
        gn, gk = Np // tn, Kp // tk

        # v7x megacore: make sure at least one "parallel" axis has >= 2 blocks.
        if cfg["two_cores"] and (Mp // tm) == 1 and gn == 1 and (Mp // 8) >= 2:
            tm = 8 * _cdiv(Mp // 8, 2)
            Mp = 2 * tm
        gm = Mp // tm

        x_in = x.astype(self.mxu_dtype) if self.mxu_dtype is not None else x
        if (Mp, Kp) != (B, D):
            x_in = jnp.pad(x_in, ((0, Mp - B), (0, Kp - D)))

        x_item = jnp.dtype(x_in.dtype).itemsize
        w_item = jnp.dtype(self.wt_p.dtype).itemsize
        b_item = jnp.dtype(self.b_p.dtype).itemsize
        o_item = jnp.dtype(out_dtype).itemsize
        cost = pl.CostEstimate(
            flops=2 * Mp * Kp * Np,
            transcendentals=0,
            bytes_accessed=(
                Mp * Kp * x_item * gn      # x re-read once per N block
                + Kp * Np * w_item * gm    # W re-read once per M block
                + Np * b_item * gm
                + Mp * Np * o_item
            ),
        )

        cp_kwargs = {}
        if cfg["vmem_limit"] is not None:
            cp_kwargs["vmem_limit_bytes"] = cfg["vmem_limit"]

        if gk == 1:
            kernel = _linear_kernel_single_k
            grid = (gm, gn)
            in_specs = [
                pl.BlockSpec((tm, Kp), lambda i, j: (i, 0)),   # x
                pl.BlockSpec((Kp, tn), lambda i, j: (0, j)),   # W^T (prepadded)
                pl.BlockSpec((1, tn), lambda i, j: (0, j)),    # bias
            ]
            out_specs = pl.BlockSpec((tm, tn), lambda i, j: (i, j))
            scratch_shapes = []
            dim_sem = ("parallel", "parallel")
        else:
            grid = (gm, gn, gk)
            in_specs = [
                pl.BlockSpec((tm, tk), lambda i, j, k: (i, k)),   # x
                pl.BlockSpec((tk, tn), lambda i, j, k: (k, j)),   # W^T (prepadded)
                pl.BlockSpec((1, tn), lambda i, j, k: (0, j)),    # bias
            ]
            out_specs = pl.BlockSpec((tm, tn), lambda i, j, k: (i, j))
            dim_sem = ("parallel", "parallel", "arbitrary")
            if out_dtype == jnp.float32:
                kernel = _linear_kernel_acc_out
                scratch_shapes = []
            else:
                kernel = _linear_kernel_acc_scratch
                scratch_shapes = [pltpu.VMEM((tm, tn), jnp.float32)]

        out_p = pl.pallas_call(
            kernel,
            out_shape=jax.ShapeDtypeStruct((Mp, Np), out_dtype),
            grid_spec=pltpu.PrefetchScalarGridSpec(
                num_scalar_prefetch=0,
                grid=grid,
                in_specs=in_specs,
                out_specs=out_specs,
                scratch_shapes=scratch_shapes,
            ),
            compiler_params=pltpu.CompilerParams(
                dimension_semantics=dim_sem, **cp_kwargs
            ),
            cost_estimate=cost,
        )(x_in, self.wt_p, self.b_p)

        if (Mp, Np) != (B, self.C):
            out_p = out_p[:B, : self.C]
        return out_p


if __name__ == "__main__":
    key = jax.random.PRNGKey(0)

    # --- 1) Small probing-Linear shape (single-tile fast path) ------------
    batch, input_dim, num_classes = 8, 32, 10
    k_x, k_w, k_b, key = jax.random.split(key, 4)
    bound = 1.0 / (input_dim ** 0.5)  # mimics nn.Linear uniform init
    x = jax.random.normal(k_x, (batch, input_dim), dtype=jnp.float32)
    w = jax.random.uniform(k_w, (num_classes, input_dim), jnp.float32, -bound, bound)
    b = jax.random.uniform(k_b, (num_classes,), jnp.float32, -bound, bound)

    lin = PallasLinear(w, b)
    out = lin(x)
    jax.block_until_ready(out)
    ref = x @ w.T + b
    assert out.shape == (batch, num_classes)
    assert jnp.allclose(out, ref, atol=1e-5, rtol=1e-5)

    # --- 2) Misaligned multi-tile shape (balanced tiles, x padding only) --
    B2, D2, C2 = 260, 640, 384
    k_x2, k_w2, k_b2, key = jax.random.split(key, 4)
    bound2 = 1.0 / (D2 ** 0.5)
    x2 = jax.random.normal(k_x2, (B2, D2), dtype=jnp.float32)
    w2 = jax.random.uniform(k_w2, (C2, D2), jnp.float32, -bound2, bound2)
    b2 = jax.random.uniform(k_b2, (C2,), jnp.float32, -bound2, bound2)

    lin2 = PallasLinear(w2, b2)
    out2 = lin2(x2)
    jax.block_until_ready(out2)
    ref2 = x2 @ w2.T + b2
    assert out2.shape == (B2, C2)
    assert jnp.allclose(out2, ref2, atol=2e-4, rtol=2e-4)

    # --- 3) Force the K-tiled accumulate-into-output path (f32) -----------
    B3, D3, C3 = 32, 512, 136
    k_x3, k_w3, k_b3, key = jax.random.split(key, 4)
    bound3 = 1.0 / (D3 ** 0.5)
    x3 = jax.random.normal(k_x3, (B3, D3), dtype=jnp.float32)
    w3 = jax.random.uniform(k_w3, (C3, D3), jnp.float32, -bound3, bound3)
    b3 = jax.random.uniform(k_b3, (C3,), jnp.float32, -bound3, bound3)

    lin3 = PallasLinear(w3, b3, tile_cap_overrides=dict(tm=512, tn=128, tk=256))
    out3 = lin3(x3)
    jax.block_until_ready(out3)
    ref3 = x3 @ w3.T + b3
    assert out3.shape == (B3, C3)
    assert jnp.allclose(out3, ref3, atol=2e-4, rtol=2e-4)

    # --- 4) bf16 MXU inputs + non-f32 output (scratch accumulator path) ---
    x4 = x3.astype(jnp.bfloat16)
    lin4 = PallasLinear(w3, b3, use_bf16_matmul=True,
                        tile_cap_overrides=dict(tm=512, tn=128, tk=256))
    out4 = lin4(x4)
    jax.block_until_ready(out4)
    assert out4.shape == (B3, C3)
    assert jnp.allclose(out4.astype(jnp.float32), ref3, atol=5e-2, rtol=5e-2)

    print("KERNEL_OK")
</pallas_src>

<mosaic_0001>
module attributes {stable_mosaic.version = 11 : i64} {
  func.func @_linear_kernel_single_k(%arg0: i32, %arg1: i32, %arg2: memref<8x128xf32, #tpu.memory_space<vmem>>, %arg3: memref<128x128xf32, #tpu.memory_space<vmem>>, %arg4: memref<1x128xf32, #tpu.memory_space<vmem>>, %arg5: memref<8x128xf32, #tpu.memory_space<vmem>>) attributes {dimension_semantics = [#tpu.dimension_semantics<parallel>, #tpu.dimension_semantics<parallel>], iteration_bounds = array<i64: 1, 1>, scalar_prefetch = 0 : i64, scratch_operands = 0 : i64, tpu.core_type = #tpu.core_type<tc>, window_params = [{transform_indices = @transform_0, window_bounds = array<i64: 8, 128>}, {transform_indices = @transform_1, window_bounds = array<i64: 128, 128>}, {transform_indices = @transform_2, window_bounds = array<i64: 1, 128>}, {transform_indices = @transform_3, window_bounds = array<i64: 8, 128>}]} {
    %c0 = arith.constant 0 : index
    %c0_0 = arith.constant 0 : index
    %0 = vector.load %arg2[%c0, %c0_0] : memref<8x128xf32, #tpu.memory_space<vmem>>, vector<8x128xf32>
    %c0_1 = arith.constant 0 : index
    %c0_2 = arith.constant 0 : index
    %1 = vector.load %arg3[%c0_1, %c0_2] : memref<128x128xf32, #tpu.memory_space<vmem>>, vector<128x128xf32>
    %cst = arith.constant dense<0.000000e+00> : vector<8x128xf32>
    %2 = tpu.matmul %0, %1, %cst {dimension_numbers = #tpu.dot_dimension_numbers<[1], [0], [0], [1], [0, 0, 1, 1], [], []>} : vector<8x128xf32>, vector<128x128xf32>, vector<8x128xf32> -> vector<8x128xf32>
    %c0_3 = arith.constant 0 : index
    %c0_4 = arith.constant 0 : index
    %3 = vector.load %arg4[%c0_3, %c0_4] : memref<1x128xf32, #tpu.memory_space<vmem>>, vector<1x128xf32>
    %4 = vector.broadcast %3 : vector<1x128xf32> to vector<8x128xf32>
    %5 = arith.addf %2, %4 : vector<8x128xf32>
    %c0_5 = arith.constant 0 : index
    %c0_6 = arith.constant 0 : index
    %6 = vector.load %arg5[%c0_5, %c0_6] : memref<8x128xf32, #tpu.memory_space<vmem>>, vector<8x128xf32>
    tpu.vector_store %arg5[%c0_5, %c0_6], %5 {strides = array<i32>} : memref<8x128xf32, #tpu.memory_space<vmem>>, vector<8x128xf32>,
    return
  }
  func.func @transform_0(%arg0: i32, %arg1: i32) -> (i32, i32) {
    %c0_i32 = arith.constant 0 : i32
    %c0_i32_0 = arith.constant 0 : i32
    return %arg0, %c0_i32 : i32, i32
  }
  func.func @transform_1(%arg0: i32, %arg1: i32) -> (i32, i32) {
    %c0_i32 = arith.constant 0 : i32
    %c0_i32_0 = arith.constant 0 : i32
    return %c0_i32, %arg1 : i32, i32
  }
  func.func @transform_2(%arg0: i32, %arg1: i32) -> (i32, i32) {
    %c0_i32 = arith.constant 0 : i32
    %c0_i32_0 = arith.constant 0 : i32
    return %c0_i32, %arg1 : i32, i32
  }
  func.func @transform_3(%arg0: i32, %arg1: i32) -> (i32, i32) {
    %c0_i32 = arith.constant 0 : i32
    return %arg0, %arg1 : i32, i32
  }
}

</mosaic_0001>

<llo_original>
// kernel: tpu_custom_call.1
$region0: #{tpu_custom_call.1}
  #allocation0 [shape = 'u32[]', space=smem, size = 0x4, offset = 0x4, fixed_abs, tag = 'smem constant byte address 0x4 - core index']
  #allocation1 [shape = 'u32[72,128]{1,0:T(1,128)}', space=vmem, size = 0x9000, scoped, tag = 'internal scratch']
  %s0 = inlined_call_operand.hbm [shape: f32[8,128], index: 0, kind: input, shape index: {}]
  %s1 = inlined_call_operand.hbm [shape: f32[128,128], index: 1, kind: input, shape index: {}]
  %s2 = inlined_call_operand.vmem [shape: f32[1,128], index: 2, kind: input, shape index: {}]
  %s3 = inlined_call_operand.hbm [shape: f32[8,128], index: 3, kind: output, shape index: {}]
  %s4 = sld [smem:[#allocation0]]
  $region30: #{tpu_custom_call.1} parent=0
    _
  %s6 = ssub.s32 1, %s4
  %s7 = scalar_select 0, %s6, %s4
  $region1: #{tpu_custom_call.1} parent=0
    #allocation2 [shape = 'u8[4096]{0}', space=vmem, size = 0x1000, scoped, tag = 'input window, operand 0, single buffered']
    #allocation3 [shape = 's32[1]{0}', space=sflag, size = 0x4, scoped, tag = 'scoped memory for tpu_custom_call.1']
    #allocation4 [shape = 's32[1]{0}', space=sflag, size = 0x4, scoped, tag = 'scoped memory for tpu_custom_call.1']
    #allocation5 [shape = 'u8[65536]{0}', space=vmem, size = 0x10000, scoped, tag = 'input window, operand 1, single buffered']
    #allocation6 [shape = 's32[1]{0}', space=sflag, size = 0x4, scoped, tag = 'scoped memory for tpu_custom_call.1']
    #allocation7 [shape = 'u8[4096]{0}', space=vmem, size = 0x1000, scoped, tag = 'output window, operand 0, single buffered']
    %8 = vsyncpa [#allocation3], 0
    %9 = vsyncpa [#allocation6], 0
    %10 = vsyncpa [#allocation4], 0
    // Predicated region
    $region2: #{tpu_custom_call.1} parent=1 // pred_check
      _
    $region3: #{tpu_custom_call.1} parent=1 // pred_check_branch
      %12 = sbr.rel (0) target = $region5
    $region4: #{tpu_custom_call.1} parent=1 // pred_region
      %14 = vsyncadd [#allocation3], 0
      %s16 = sshll.u32 %s0, 4
      %s17 = int_to_ptr.hbm [resolvable:$true] %s16
      %s18 = sshll.u32 [#allocation2], 4
      %s19 = int_to_ptr.vmem [resolvable:$true] %s18
      %21 = dma.hbm_to_vmem [thread:$0]  %s17, 128, %s19, [#allocation3]
    $region5: #{tpu_custom_call.1} parent=1 // pred_fallthru
      _
    // Predicated region
    $region6: #{tpu_custom_call.1} parent=1 // pred_check
      _
    $region7: #{tpu_custom_call.1} parent=1 // pred_check_branch
      %23 = sbr.rel (0) target = $region9
    $region8: #{tpu_custom_call.1} parent=1 // pred_region
      %25 = vsyncadd [#allocation6], 0
      %s26 = sshll.u32 %s1, 4
      %s27 = int_to_ptr.hbm [resolvable:$true] %s26
      %s28 = sshll.u32 [#allocation5], 4
      %s29 = int_to_ptr.vmem [resolvable:$true] %s28
      %34 = dma.hbm_to_vmem [thread:$0]  %s27, 2048, %s29, [#allocation6], 128, 128, 8
    $region9: #{tpu_custom_call.1} parent=1 // pred_fallthru
      _
    // Predicated region
    $region10: #{tpu_custom_call.1} parent=1 // pred_check
      _
    $region11: #{tpu_custom_call.1} parent=1 // pred_check_branch
      %36 = sbr.rel (0) target = $region13
    $region12: #{tpu_custom_call.1} parent=1 // pred_region
      _
    $region13: #{tpu_custom_call.1} parent=1 // pred_fallthru
      _
    // Predicated region
    $region14: #{tpu_custom_call.1} parent=1 // pred_check
      _
    $region15: #{tpu_custom_call.1} parent=1 // pred_check_branch
      %38 = sbr.rel (0) target = $region17
    $region16: #{tpu_custom_call.1} parent=1 // pred_region
      %40 = dma.done [#allocation3], 128
    $region17: #{tpu_custom_call.1} parent=1 // pred_fallthru
      _
    // Predicated region
    $region18: #{tpu_custom_call.1} parent=1 // pred_check
      _
    $region19: #{tpu_custom_call.1} parent=1 // pred_check_branch
      %42 = sbr.rel (0) target = $region21
    $region20: #{tpu_custom_call.1} parent=1 // pred_region
      %44 = dma.done [#allocation6], 2048
    $region21: #{tpu_custom_call.1} parent=1 // pred_fallthru
      _
    %v45 = vld [vmem:[#allocation2] sm:$0xff]
    %v46 = vld [vmem:[#allocation5] sm:$0xff]
    %v47 = vld [vmem:[#allocation5 + $0x8] sm:$0xff]
    %v48 = vld [vmem:[#allocation5 + $0x10] sm:$0xff]
    %v49 = vld [vmem:[#allocation5 + $0x18] sm:$0xff]
    %v50 = vld [vmem:[#allocation5 + $0x20] sm:$0xff]
    %v51 = vld [vmem:[#allocation5 + $0x28] sm:$0xff]
    %v52 = vld [vmem:[#allocation5 + $0x30] sm:$0xff]
    %v53 = vld [vmem:[#allocation5 + $0x38] sm:$0xff]
    %v54 = vld [vmem:[#allocation5 + $0x40] sm:$0xff]
    %v55 = vld [vmem:[#allocation5 + $0x48] sm:$0xff]
    %v56 = vld [vmem:[#allocation5 + $0x50] sm:$0xff]
    %v57 = vld [vmem:[#allocation5 + $0x58] sm:$0xff]
    %v58 = vld [vmem:[#allocation5 + $0x60] sm:$0xff]
    %v59 = vld [vmem:[#allocation5 + $0x68] sm:$0xff]
    %v60 = vld [vmem:[#allocation5 + $0x70] sm:$0xff]
    %v61 = vld [vmem:[#allocation5 + $0x78] sm:$0xff]
    %v62 = vld [vmem:[%s2] sm:$0x1]
    %v64 = vperm.slane %v62, 0
    %66 = vmatpush.msra.mxu0 %v61
    %67 = vmatpush.msra.mxu0 %v60
    %68 = vmatpush.msra.mxu0 %v59
    %69 = vmatpush.msra.mxu0 %v58
    %70 = vmatpush.msra.mxu0 %v57
    %71 = vmatpush.msra.mxu0 %v56
    %72 = vmatpush.msra.mxu0 %v55
    %73 = vmatpush.msra.mxu0 %v54
    %74 = vmatpush.msra.mxu0 %v53
    %75 = vmatpush.msra.mxu0 %v52
    %76 = vmatpush.msra.mxu0 %v51
    %77 = vmatpush.msra.mxu0 %v50
    %78 = vmatpush.msra.mxu0 %v49
    %79 = vmatpush.msra.mxu0 %v48
    %80 = vmatpush.msra.mxu0 %v47
    %81 = vmatpush.msra.mxu0 %v46
    %82 = vmatmul.f32.gmra.mxu0 %v45
    %v83 = vpop.f32.mrf.mxu0
    %v84 = vadd.f32 %v64, %v83
    %85 = vdwg.mxu0
    %86 = vst [vmem:[#allocation7] sm:$0xff] %v84
    // Predicated region
    $region22: #{tpu_custom_call.1} parent=1 // pred_check
      _
    $region23: #{tpu_custom_call.1} parent=1 // pred_check_branch
      %88 = sbr.rel (0) target = $region25
    $region24: #{tpu_custom_call.1} parent=1 // pred_region
      %90 = vsyncadd [#allocation4], 0
      %s92 = sshll.u32 [#allocation7], 4
      %s93 = int_to_ptr.vmem [resolvable:$true] %s92
      %s94 = sshll.u32 %s3, 4
      %s95 = int_to_ptr.hbm [resolvable:$true] %s94
      %97 = dma.vmem_to_hbm [thread:$0]  %s93, 128, %s95, [#allocation4]
    $region25: #{tpu_custom_call.1} parent=1 // pred_fallthru
      _
    // Predicated region
    $region26: #{tpu_custom_call.1} parent=1 // pred_check
      _
    $region27: #{tpu_custom_call.1} parent=1 // pred_check_branch
      %99 = sbr.rel (0) target = $region29
    $region28: #{tpu_custom_call.1} parent=1 // pred_region
      %101 = dma.done [#allocation4], 128
    $region29: #{tpu_custom_call.1} parent=1 // pred_fallthru
      _
    %102 = vsyncpa [#allocation3], 1
    %103 = vsyncpa [#allocation6], 1
    %104 = vsyncpa [#allocation4], 1

</llo_original>
